<compile_context>
chip_gen: v6e
topology: v6e:2x2x1
jax: 0.10.0
libtpu: 0.0.40
codegen_flags: <defaults>
</compile_context>

<pallas_src>
import functools

import jax
import jax.numpy as jnp
from jax.experimental import pallas as pl
from jax.experimental.pallas import tpu as pltpu

# Same constant as the PyTorch module.
_FACTOR = (300 + 400 + 900) / 300 / 1000
CAP = 300400.0 * _FACTOR

_POINTS_PER_DAY = 96
_MAX_TILE_DAYS = 4096      # days per grid step (per review: 2048-4096)
_NUM_CORE_SPLITS = 2       # day axis split across 2 TensorCores on v7x


def _accuracy_metric_kernel(pred_ref, true_ref, out_ref, acc_ref, *,
                            cap, num_days, fold, tile_rows, tiles_per_core,
                            total_full_tiles, needs_mask):
    """One grid step processes a (tile_rows, 96*fold) slab (fold days per row)."""
    c = pl.program_id(0)                      # core-split index ("parallel")
    i = pl.program_id(1)                      # tile index in this core's range
    logical_tile = c * tiles_per_core + i     # un-clamped global tile index
    ppr = _POINTS_PER_DAY * fold              # lane width of one folded row

    # Zero this core's resident accumulator on its first tile.
    @pl.when(i == 0)
    def _init():
        acc_ref[...] = jnp.zeros_like(acc_ref)

    # Cast on the VMEM tile (cheap VPU op); inputs were DMA'd in native dtype.
    pred = pred_ref[...].astype(jnp.float32)          # (tile_rows, ppr)
    true = true_ref[...].astype(jnp.float32)          # (tile_rows, ppr)

    thr = jnp.float32(0.2 * cap)
    denom = jnp.maximum(true, thr)                    # == where(true > thr, true, thr)
    inv = pl.reciprocal(denom, approx=True)           # EUP slot; denom >= thr > 0
    err = ((true - pred) * inv) ** 2                  # (tile_rows, ppr)

    # Per-day error sums on the MXU: err @ block-diagonal segment-ones matrix.
    pos = jax.lax.broadcasted_iota(jnp.int32, (ppr, fold), 0)
    day = jax.lax.broadcasted_iota(jnp.int32, (ppr, fold), 1)
    seg = jnp.logical_and(pos >= day * _POINTS_PER_DAY,
                          pos < (day + 1) * _POINTS_PER_DAY).astype(jnp.float32)
    error_sum = jnp.dot(err, seg, preferred_element_type=jnp.float32)  # (tile_rows, fold)

    score = (1.0 - jnp.sqrt(error_sum * jnp.float32(1.0 / _POINTS_PER_DAY))) * 100.0

    if needs_mask:
        # Fast path: tiles fully covered by valid days skip the mask entirely.
        @pl.when(logical_tile < total_full_tiles)
        def _full():
            acc_ref[...] += jnp.sum(score, keepdims=True)

        # Slow path: partial real tile and clamped dummy tiles.  Select-form
        # masking (jnp.where) fully overwrites NaN/Inf scores from garbage rows.
        @pl.when(logical_tile >= total_full_tiles)
        def _masked():
            row = jax.lax.broadcasted_iota(jnp.int32, score.shape, 0)
            col = jax.lax.broadcasted_iota(jnp.int32, score.shape, 1)
            day_idx = (logical_tile * tile_rows + row) * fold + col
            acc_ref[...] += jnp.sum(
                jnp.where(day_idx < num_days, score, 0.0), keepdims=True)
    else:
        acc_ref[...] += jnp.sum(score, keepdims=True)

    # On this core's last tile, publish its partial sum to its output slab.
    @pl.when(i == pl.num_programs(1) - 1)
    def _finalize():
        out_ref[...] = jnp.broadcast_to(acc_ref[...], out_ref.shape)


def accuracy_metric_loss(pred, true, cap=CAP, max_tile_days=_MAX_TILE_DAYS):
    assert pred.shape == true.shape, (
        "Shape mismatch between prediction and ground truth arrays")
    n = true.shape[0]
    num_days = n // _POINTS_PER_DAY
    if num_days == 0:
        raise ValueError(
            "Input data does not contain a complete day (96 time points).")

    # Fold 4 days per row when possible -> lane-dense 384-wide rows (3x128).
    fold = 4 if num_days % 4 == 0 else 1
    ppr = _POINTS_PER_DAY * fold
    num_rows = num_days // fold

    # Truncate to complete days; reshape is layout-only (no dtype cast here --
    # the f32 cast happens inside the kernel on the VMEM tile).
    pred2 = pred[: num_days * _POINTS_PER_DAY].reshape(num_rows, ppr)
    true2 = true[: num_days * _POINTS_PER_DAY].reshape(num_rows, ppr)

    # Row tiling: full-extent block for small inputs (block == array dims is
    # legal for any size), otherwise large tiles rounded DOWN to a multiple of
    # 8 sublanes (correctness requirement of the (8,128) tiling rule).
    max_rows = max(8, max_tile_days // fold)
    if num_rows <= max_rows:
        tile_rows = num_rows
    else:
        tile_rows = (max_rows // 8) * 8

    total_tiles = pl.cdiv(num_rows, tile_rows)               # real tiles in the array
    tiles_per_core = pl.cdiv(total_tiles, _NUM_CORE_SPLITS)  # inner grid extent
    # Tiles with logical index >= total_full_tiles may contain days >= num_days.
    total_full_tiles = num_days // (tile_rows * fold)
    needs_mask = (_NUM_CORE_SPLITS * tiles_per_core * tile_rows * fold) != num_days

    itemsize = jnp.dtype(pred2.dtype).itemsize
    cost = pl.CostEstimate(
        flops=8 * num_days * _POINTS_PER_DAY,
        transcendentals=num_days * _POINTS_PER_DAY + num_days,  # reciprocals + sqrt
        bytes_accessed=2 * num_days * _POINTS_PER_DAY * itemsize
        + _NUM_CORE_SPLITS * 8 * 128 * 4,
    )

    def _row_block(c, i):
        # Clamp so a core's trailing dummy tiles re-read the last real tile
        # (no OOB DMA); their contributions are masked via day_idx >= num_days.
        return (jnp.minimum(c * tiles_per_core + i, total_tiles - 1), 0)

    partials = pl.pallas_call(
        functools.partial(
            _accuracy_metric_kernel,
            cap=float(cap), num_days=num_days, fold=fold, tile_rows=tile_rows,
            tiles_per_core=tiles_per_core, total_full_tiles=total_full_tiles,
            needs_mask=needs_mask),
        # One lane-dense (8,128) slab per core split (avoids lane-sparse stores
        # and gives each TensorCore its own output block under "parallel").
        out_shape=jax.ShapeDtypeStruct((_NUM_CORE_SPLITS, 8, 128), jnp.float32),
        grid=(_NUM_CORE_SPLITS, tiles_per_core),
        in_specs=[
            pl.BlockSpec((tile_rows, ppr), _row_block),
            pl.BlockSpec((tile_rows, ppr), _row_block),
        ],
        out_specs=pl.BlockSpec((1, 8, 128), lambda c, i: (c, 0, 0)),
        scratch_shapes=[pltpu.VMEM((1, 1), jnp.float32)],   # per-core accumulator
        compiler_params=pltpu.CompilerParams(
            dimension_semantics=("parallel", "arbitrary")),  # core split / reduction
        cost_estimate=cost,
    )(pred2, true2)

    # Finish the mean in the wrapper: sum the two per-core partials.
    return (partials[0, 0, 0] + partials[1, 0, 0]) / num_days


def _reference(pred, true, cap=CAP):
    # Plain-JAX reference matching the PyTorch loops.
    num_days = true.shape[0] // _POINTS_PER_DAY
    p = pred[: num_days * 96].reshape(num_days, 96).astype(jnp.float32)
    t = true[: num_days * 96].reshape(num_days, 96).astype(jnp.float32)
    thr = 0.2 * cap
    denom = jnp.where(t > thr, t, thr)
    err_sum = jnp.sum(((t - p) / denom) ** 2, axis=-1)
    score = (1.0 - jnp.sqrt(err_sum / 96.0)) * 100.0
    return jnp.mean(score)


if __name__ == "__main__":
    key = jax.random.PRNGKey(0)
    k1, k2, k3 = jax.random.split(key, 3)

    def _make(num_days, k):
        ka, kb = jax.random.split(k)
        n = num_days * _POINTS_PER_DAY
        true = jax.random.uniform(ka, (n,), jnp.float32, minval=0.0, maxval=CAP)
        pred = true + 0.05 * CAP * jax.random.normal(kb, (n,), jnp.float32)
        return pred, true

    # Tolerances account for the approximate EUP reciprocal (error O(1e-3) on a
    # score of O(100)) and MXU summation order.
    RTOL, ATOL = 2e-3, 1e-1

    # Case 1: small single-tile folded path (8 days -> 2 rows x 384 lanes).
    pred, true = _make(8, k1)
    out = jax.block_until_ready(accuracy_metric_loss(pred, true))
    ref = jax.block_until_ready(_reference(pred, true))
    assert jnp.allclose(out, ref, rtol=RTOL, atol=ATOL), (out, ref)

    # Case 2: folded multi-tile path with a masked partial tile
    # (36 days, forced 32-day tiles -> 2 tiles, one per core split).
    pred, true = _make(36, k2)
    out = jax.block_until_ready(accuracy_metric_loss(pred, true, max_tile_days=32))
    ref = jax.block_until_ready(_reference(pred, true))
    assert jnp.allclose(out, ref, rtol=RTOL, atol=ATOL), (out, ref)

    # Case 3: unfolded fallback (10 days, not a multiple of 4) with a partial tile.
    pred, true = _make(10, k3)
    out = jax.block_until_ready(accuracy_metric_loss(pred, true, max_tile_days=8))
    ref = jax.block_until_ready(_reference(pred, true))
    assert jnp.allclose(out, ref, rtol=RTOL, atol=ATOL), (out, ref)

    print("KERNEL_OK")
</pallas_src>

<mosaic_0001>
module attributes {stable_mosaic.version = 11 : i64} {
  func.func @_accuracy_metric_kernel(%arg0: i32, %arg1: i32, %arg2: memref<2x384xf32, #tpu.memory_space<vmem>>, %arg3: memref<2x384xf32, #tpu.memory_space<vmem>>, %arg4: memref<1x8x128xf32, #tpu.memory_space<vmem>>, %arg5: memref<1x1xf32, #tpu.memory_space<vmem>>) attributes {dimension_semantics = [#tpu.dimension_semantics<parallel>, #tpu.dimension_semantics<arbitrary>], iteration_bounds = array<i64: 2, 1>, scalar_prefetch = 0 : i64, scratch_operands = 1 : i64, tpu.core_type = #tpu.core_type<tc>, window_params = [{transform_indices = @transform_0, window_bounds = array<i64: 2, 384>}, {transform_indices = @transform_1, window_bounds = array<i64: 2, 384>}, {transform_indices = @transform_2, window_bounds = array<i64: 1, 8, 128>}]} {
    %c1_i32 = arith.constant 1 : i32
    %0 = arith.muli %arg0, %c1_i32 : i32
    %1 = arith.addi %0, %arg1 : i32
    %c0_i32 = arith.constant 0 : i32
    %2 = arith.cmpi eq, %arg1, %c0_i32 : i32
    %3 = arith.extui %2 : i1 to i32
    %c0_i32_0 = arith.constant 0 : i32
    %4 = arith.cmpi ne, %3, %c0_i32_0 : i32
    scf.if %4 {
      %cst_16 = arith.constant 0.000000e+00 : f32
      %43 = vector.broadcast %cst_16 : f32 to vector<1x1xf32>
      %c0_17 = arith.constant 0 : index
      %c0_18 = arith.constant 0 : index
      %44 = vector.load %arg5[%c0_17, %c0_18] : memref<1x1xf32, #tpu.memory_space<vmem>>, vector<1x1xf32>
      tpu.vector_store %arg5[%c0_17, %c0_18], %43 {strides = array<i32>} : memref<1x1xf32, #tpu.memory_space<vmem>>, vector<1x1xf32>,
    } else {
    }
    %c0 = arith.constant 0 : index
    %c0_1 = arith.constant 0 : index
    %5 = vector.load %arg2[%c0, %c0_1] : memref<2x384xf32, #tpu.memory_space<vmem>>, vector<2x384xf32>
    %c0_2 = arith.constant 0 : index
    %c0_3 = arith.constant 0 : index
    %6 = vector.load %arg3[%c0_2, %c0_3] : memref<2x384xf32, #tpu.memory_space<vmem>>, vector<2x384xf32>
    %cst = arith.constant 320.426666 : f32
    %7 = vector.broadcast %cst : f32 to vector<2x384xf32>
    %8 = arith.maximumf %6, %7 : vector<2x384xf32>
    %9 = tpu.reciprocal %8 {approx = true} : vector<2x384xf32> -> vector<2x384xf32>
    %10 = arith.subf %6, %5 : vector<2x384xf32>
    %11 = arith.mulf %10, %9 : vector<2x384xf32>
    %12 = arith.mulf %11, %11 : vector<2x384xf32>
    %13 = tpu.iota {dimensions = array<i32: 0>} : vector<384x4xi32>
    %14 = tpu.iota {dimensions = array<i32: 1>} : vector<384x4xi32>
    %c96_i32 = arith.constant 96 : i32
    %15 = vector.broadcast %c96_i32 : i32 to vector<384x4xi32>
    %16 = arith.muli %14, %15 : vector<384x4xi32>
    %17 = arith.cmpi sge, %13, %16 : vector<384x4xi32>
    %c1_i32_4 = arith.constant 1 : i32
    %18 = vector.broadcast %c1_i32_4 : i32 to vector<384x4xi32>
    %19 = arith.addi %14, %18 : vector<384x4xi32>
    %c96_i32_5 = arith.constant 96 : i32
    %20 = vector.broadcast %c96_i32_5 : i32 to vector<384x4xi32>
    %21 = arith.muli %19, %20 : vector<384x4xi32>
    %22 = arith.cmpi slt, %13, %21 : vector<384x4xi32>
    %23 = arith.andi %17, %22 : vector<384x4xi1>
    %24 = arith.extui %23 : vector<384x4xi1> to vector<384x4xi32>
    %25 = arith.sitofp %24 : vector<384x4xi32> to vector<384x4xf32>
    %cst_6 = arith.constant dense<0.000000e+00> : vector<2x4xf32>
    %26 = tpu.matmul %12, %25, %cst_6 {dimension_numbers = #tpu.dot_dimension_numbers<[1], [0], [0], [1], [0, 0, 1, 1], [], []>} : vector<2x384xf32>, vector<384x4xf32>, vector<2x4xf32> -> vector<2x4xf32>
    %cst_7 = arith.constant 0.010416667 : f32
    %27 = vector.broadcast %cst_7 : f32 to vector<2x4xf32>
    %28 = arith.mulf %26, %27 : vector<2x4xf32>
    %29 = math.sqrt %28 : vector<2x4xf32>
    %cst_8 = arith.constant 1.000000e+00 : f32
    %30 = vector.broadcast %cst_8 : f32 to vector<2x4xf32>
    %31 = arith.subf %30, %29 : vector<2x4xf32>
    %cst_9 = arith.constant 1.000000e+02 : f32
    %32 = vector.broadcast %cst_9 : f32 to vector<2x4xf32>
    %33 = arith.mulf %31, %32 : vector<2x4xf32>
    %c1_i32_10 = arith.constant 1 : i32
    %34 = arith.cmpi slt, %1, %c1_i32_10 : i32
    %35 = arith.extui %34 : i1 to i32
    %c0_i32_11 = arith.constant 0 : i32
    %36 = arith.cmpi ne, %35, %c0_i32_11 : i32
    scf.if %36 {
      %c0_16 = arith.constant 0 : index
      %c0_17 = arith.constant 0 : index
      %43 = vector.load %arg5[%c0_16, %c0_17] : memref<1x1xf32, #tpu.memory_space<vmem>>, vector<1x1xf32>
      %44 = vector.shape_cast %33 : vector<2x4xf32> to vector<1x2x4xf32>
      %cst_18 = arith.constant dense<0.000000e+00> : vector<1xf32>
      %45 = vector.multi_reduction <add>, %44, %cst_18 [1, 2] : vector<1x2x4xf32> to vector<1xf32>
      %46 = vector.shape_cast %45 : vector<1xf32> to vector<1x1x1xf32>
      %47 = vector.extract %46[0, 0, 0] : f32 from vector<1x1x1xf32>
      %48 = vector.broadcast %47 : f32 to vector<1x1xf32>
      %49 = arith.addf %43, %48 : vector<1x1xf32>
      %c0_19 = arith.constant 0 : index
      %c0_20 = arith.constant 0 : index
      %50 = vector.load %arg5[%c0_19, %c0_20] : memref<1x1xf32, #tpu.memory_space<vmem>>, vector<1x1xf32>
      tpu.vector_store %arg5[%c0_19, %c0_20], %49 {strides = array<i32>} : memref<1x1xf32, #tpu.memory_space<vmem>>, vector<1x1xf32>,
    } else {
    }
    %c1_i32_12 = arith.constant 1 : i32
    %37 = arith.cmpi sge, %1, %c1_i32_12 : i32
    %38 = arith.extui %37 : i1 to i32
    %c0_i32_13 = arith.constant 0 : i32
    %39 = arith.cmpi ne, %38, %c0_i32_13 : i32
    scf.if %39 {
      %43 = tpu.iota {dimensions = array<i32: 0>} : vector<2x4xi32>
      %44 = tpu.iota {dimensions = array<i32: 1>} : vector<2x4xi32>
      %c2_i32 = arith.constant 2 : i32
      %45 = arith.muli %1, %c2_i32 : i32
      %46 = vector.broadcast %45 : i32 to vector<2x4xi32>
      %47 = arith.addi %46, %43 : vector<2x4xi32>
      %c4_i32 = arith.constant 4 : i32
      %48 = vector.broadcast %c4_i32 : i32 to vector<2x4xi32>
      %49 = arith.muli %47, %48 : vector<2x4xi32>
      %50 = arith.addi %49, %44 : vector<2x4xi32>
      %c0_16 = arith.constant 0 : index
      %c0_17 = arith.constant 0 : index
      %51 = vector.load %arg5[%c0_16, %c0_17] : memref<1x1xf32, #tpu.memory_space<vmem>>, vector<1x1xf32>
      %c8_i32 = arith.constant 8 : i32
      %52 = vector.broadcast %c8_i32 : i32 to vector<2x4xi32>
      %53 = arith.cmpi slt, %50, %52 : vector<2x4xi32>
      %cst_18 = arith.constant 0.000000e+00 : f32
      %54 = vector.broadcast %cst_18 : f32 to vector<2x4xf32>
      %55 = arith.select %53, %33, %54 : vector<2x4xi1>, vector<2x4xf32>
      %56 = vector.shape_cast %55 : vector<2x4xf32> to vector<1x2x4xf32>
      %cst_19 = arith.constant dense<0.000000e+00> : vector<1xf32>
      %57 = vector.multi_reduction <add>, %56, %cst_19 [1, 2] : vector<1x2x4xf32> to vector<1xf32>
      %58 = vector.shape_cast %57 : vector<1xf32> to vector<1x1x1xf32>
      %59 = vector.extract %58[0, 0, 0] : f32 from vector<1x1x1xf32>
      %60 = vector.broadcast %59 : f32 to vector<1x1xf32>
      %61 = arith.addf %51, %60 : vector<1x1xf32>
      %c0_20 = arith.constant 0 : index
      %c0_21 = arith.constant 0 : index
      %62 = vector.load %arg5[%c0_20, %c0_21] : memref<1x1xf32, #tpu.memory_space<vmem>>, vector<1x1xf32>
      tpu.vector_store %arg5[%c0_20, %c0_21], %61 {strides = array<i32>} : memref<1x1xf32, #tpu.memory_space<vmem>>, vector<1x1xf32>,
    } else {
    }
    %c0_i32_14 = arith.constant 0 : i32
    %40 = arith.cmpi eq, %arg1, %c0_i32_14 : i32
    %41 = arith.extui %40 : i1 to i32
    %c0_i32_15 = arith.constant 0 : i32
    %42 = arith.cmpi ne, %41, %c0_i32_15 : i32
    scf.if %42 {
      %c0_16 = arith.constant 0 : index
      %c0_17 = arith.constant 0 : index
      %43 = vector.load %arg5[%c0_16, %c0_17] : memref<1x1xf32, #tpu.memory_space<vmem>>, vector<1x1xf32>
      %44 = vector.shape_cast %43 : vector<1x1xf32> to vector<1x1x1xf32>
      %45 = vector.broadcast %44 : vector<1x1x1xf32> to vector<1x8x128xf32>
      %c0_18 = arith.constant 0 : index
      %c0_19 = arith.constant 0 : index
      %c0_20 = arith.constant 0 : index
      %46 = vector.load %arg4[%c0_18, %c0_19, %c0_20] : memref<1x8x128xf32, #tpu.memory_space<vmem>>, vector<1x8x128xf32>
      tpu.vector_store %arg4[%c0_18, %c0_19, %c0_20], %45 {strides = array<i32>} : memref<1x8x128xf32, #tpu.memory_space<vmem>>, vector<1x8x128xf32>,
    } else {
    }
    return
  }
  func.func @transform_0(%arg0: i32, %arg1: i32) -> (i32, i32) {
    %c1_i32 = arith.constant 1 : i32
    %0 = arith.muli %arg0, %c1_i32 : i32
    %1 = arith.addi %0, %arg1 : i32
    %c0_i32 = arith.constant 0 : i32
    %2 = arith.minsi %1, %c0_i32 : i32
    %c0_i32_0 = arith.constant 0 : i32
    %c0_i32_1 = arith.constant 0 : i32
    return %2, %c0_i32_0 : i32, i32
  }
  func.func @transform_1(%arg0: i32, %arg1: i32) -> (i32, i32) {
    %c1_i32 = arith.constant 1 : i32
    %0 = arith.muli %arg0, %c1_i32 : i32
    %1 = arith.addi %0, %arg1 : i32
    %c0_i32 = arith.constant 0 : i32
    %2 = arith.minsi %1, %c0_i32 : i32
    %c0_i32_0 = arith.constant 0 : i32
    %c0_i32_1 = arith.constant 0 : i32
    return %2, %c0_i32_0 : i32, i32
  }
  func.func @transform_2(%arg0: i32, %arg1: i32) -> (i32, i32, i32) {
    %c0_i32 = arith.constant 0 : i32
    %c0_i32_0 = arith.constant 0 : i32
    %c0_i32_1 = arith.constant 0 : i32
    return %arg0, %c0_i32, %c0_i32_0 : i32, i32, i32
  }
}

</mosaic_0001>

<llo_original>
// kernel: tpu_custom_call.1
$region0: #{tpu_custom_call.1}
  #allocation0 [shape = 'u32[]', space=smem, size = 0x4, offset = 0x4, fixed_abs, tag = 'smem constant byte address 0x4 - core index']
  #allocation1 [shape = 'u32[144,128]{1,0:T(1,128)}', space=vmem, size = 0x12000, scoped, tag = 'internal scratch']
  #allocation2 [shape = 'f32[1,1]{1,0:T(1,128)}', space=vmem, size = 0x200, scoped, tag = 'scratch operand']
  %s0 = inlined_call_operand.hbm [shape: f32[2,384], index: 0, kind: input, shape index: {}]
  %s1 = inlined_call_operand.hbm [shape: f32[2,384], index: 1, kind: input, shape index: {}]
  %s2 = inlined_call_operand.hbm [shape: f32[2,8,128], index: 2, kind: output, shape index: {}]
  %s3 = sld [smem:[#allocation0]]
  $region65: #{tpu_custom_call.1} parent=0
    _
  %s5 = ssub.s32 1, %s3
  %s6 = scalar_select 0, %s5, %s3
  $region1: #{tpu_custom_call.1} parent=0
    #allocation3 [shape = 'u8[6144]{0}', space=vmem, size = 0x1800, scoped, tag = 'input window, operand 0']
    #allocation4 [shape = 's32[2]{0}', space=sflag, size = 0x8, scoped, tag = 'scoped memory for tpu_custom_call.1']
    #allocation5 [shape = 's32[2]{0}', space=sflag, size = 0x8, scoped, tag = 'scoped memory for tpu_custom_call.1']
    #allocation6 [shape = 'u8[6144]{0}', space=vmem, size = 0x1800, scoped, tag = 'input window, operand 1']
    #allocation7 [shape = 's32[2]{0}', space=sflag, size = 0x8, scoped, tag = 'scoped memory for tpu_custom_call.1']
    #allocation8 [shape = 'u8[8192]{0}', space=vmem, size = 0x2000, scoped, tag = 'output window, operand 0']
    %7 = vsyncpa [#allocation4], 0
    %s8 = scalar_lea.sflag [#allocation4], 1
    %9 = vsyncpa %s8, 0
    %10 = vsyncpa [#allocation7], 0
    %s11 = scalar_lea.sflag [#allocation7], 1
    %12 = vsyncpa %s11, 0
    %13 = vsyncpa [#allocation5], 0
    %s14 = scalar_lea.sflag [#allocation5], 1
    %15 = vsyncpa %s14, 0
    loop: start=0, step=1, limit=4
    $region2: #{tpu_custom_call.1} parent=1 // loop_pre_header
      _
    $region3: #{tpu_custom_call.1} parent=1 // loop_header
      %s17 = sphi 0, %s21
      %p18 = scmp.ge.s32.totalorder %s17, 4
      %s24 = sphi 0, %s36
      %s25 = sphi 0, %s32
      %s26 = sphi 0, %s24
      %s27 = sphi 0, %s25
      %s28 = sphi 0, %s26
      %s29 = sphi 0, %s27
      %s45 = sphi 0, %s47
      %s48 = sphi 0, %s45
      %s49 = sphi 0, %s48
      %s65 = sphi 0, %s49
      %s77 = sphi 0, %s79
      %s80 = sphi 0, %s77
      %s81 = sphi 0, %s80
      %s97 = sphi 0, %s81
      %s103 = sphi 0, %s105
      %s106 = sphi 0, %s103
      %s107 = sphi 0, %s106
      %s123 = sphi 0, %s107
    $region4: #{tpu_custom_call.1} parent=1 // loop_header_branch
      %20 = sbr.rel (%p18) target = $region8
    $region5: #{tpu_custom_call.1} parent=1 // loop_body
      %s22 = ssub.s32 %s17, 1
      %s23 = ssub.s32 %s17, 2
      %s30 = sadd.s32 1, %s25
      %p31 = scmp.ge.s32.totalorder %s30, 1
      %s32 = scalar_select %p31, 0, %s30
      %s33 = sadd.s32 1, %s24
      %s34 = scalar_select %p31, %s33, %s24
      %p35 = scmp.ge.s32.totalorder %s34, 2
      %s36 = scalar_select %p35, 0, %s34
      %s37 = sadd.s32 %s24, %s25
      %p38 = scmp.lt.s32.totalorder %s37, 0
      %s39 = scalar_select %p38, %s37, 0
      %s40 = sadd.s32 %s36, %s32
      %p41 = scmp.lt.s32.totalorder %s40, 0
      %s42 = scalar_select %p41, %s40, 0
      %s43 = ssub.s32 %s39, %s42
      %p44 = scmp.eq.s32.totalorder %s43, 0
      %s46 = sadd.s32 %s45, 1
      %s47 = scalar_select %p44, %s45, %s46
      %p50 = pneg %p44
      %p51 = scmp.eq.s32.totalorder %s17, 1
      %p52 = por %p50, %p51
      %p53 = scmp.ne.s32.totalorder %s45, %s48
      %p54 = scmp.eq.s32.totalorder %s17, 0
      %p55 = por %p53, %p54
      %p56 = scmp.ne.s32.totalorder %s45, %s48
      %p57 = scmp.eq.s32.totalorder %s22, 1
      %p58 = por %p56, %p57
      %p59 = scmp.ne.s32.totalorder %s48, %s49
      %p60 = scmp.eq.s32.totalorder %s22, 0
      %p61 = por %p59, %p60
      %p62 = scmp.ne.s32.totalorder %s48, %s49
      %p63 = scmp.eq.s32.totalorder %s23, 1
      %p64 = por %p62, %p63
      %p66 = scmp.ne.s32.totalorder %s49, %s65
      %p67 = scmp.eq.s32.totalorder %s23, 0
      %p68 = por %p66, %p67
      %s69 = sadd.s32 %s24, %s25
      %p70 = scmp.lt.s32.totalorder %s69, 0
      %s71 = scalar_select %p70, %s69, 0
      %s72 = sadd.s32 %s36, %s32
      %p73 = scmp.lt.s32.totalorder %s72, 0
      %s74 = scalar_select %p73, %s72, 0
      %s75 = ssub.s32 %s71, %s74
      %p76 = scmp.eq.s32.totalorder %s75, 0
      %s78 = sadd.s32 %s77, 1
      %s79 = scalar_select %p76, %s77, %s78
      %p82 = pneg %p76
      %p83 = scmp.eq.s32.totalorder %s17, 1
      %p84 = por %p82, %p83
      %p85 = scmp.ne.s32.totalorder %s77, %s80
      %p86 = scmp.eq.s32.totalorder %s17, 0
      %p87 = por %p85, %p86
      %p88 = scmp.ne.s32.totalorder %s77, %s80
      %p89 = scmp.eq.s32.totalorder %s22, 1
      %p90 = por %p88, %p89
      %p91 = scmp.ne.s32.totalorder %s80, %s81
      %p92 = scmp.eq.s32.totalorder %s22, 0
      %p93 = por %p91, %p92
      %p94 = scmp.ne.s32.totalorder %s80, %s81
      %p95 = scmp.eq.s32.totalorder %s23, 1
      %p96 = por %p94, %p95
      %p98 = scmp.ne.s32.totalorder %s81, %s97
      %p99 = scmp.eq.s32.totalorder %s23, 0
      %p100 = por %p98, %p99
      %s101 = ssub.s32 %s24, %s36
      %p102 = scmp.eq.s32.totalorder %s101, 0
      %s104 = sadd.s32 %s103, 1
      %s105 = scalar_select %p102, %s103, %s104
      %p108 = pneg %p102
      %p109 = scmp.eq.s32.totalorder %s17, 1
      %p110 = por %p108, %p109
      %p111 = scmp.ne.s32.totalorder %s103, %s106
      %p112 = scmp.eq.s32.totalorder %s17, 0
      %p113 = por %p111, %p112
      %p114 = scmp.ne.s32.totalorder %s103, %s106
      %p115 = scmp.eq.s32.totalorder %s22, 1
      %p116 = por %p114, %p115
      %p117 = scmp.ne.s32.totalorder %s106, %s107
      %p118 = scmp.eq.s32.totalorder %s22, 0
      %p119 = por %p117, %p118
      %p120 = scmp.ne.s32.totalorder %s106, %s107
      %p121 = scmp.eq.s32.totalorder %s23, 1
      %p122 = por %p120, %p121
      %p124 = scmp.ne.s32.totalorder %s107, %s123
      %p125 = scmp.eq.s32.totalorder %s23, 0
      %p126 = por %p124, %p125
      %p127 = scmp.le.s32.totalorder 1, %s17
      %p128 = scmp.lt.s32.totalorder %s17, 3
      %p129 = pnand %p127, %p128
      %p130 = pneg %p129
      // Predicated region
      $region9: #{tpu_custom_call.1} parent=5 // pred_check
        _
      $region10: #{tpu_custom_call.1} parent=5 // pred_check_branch
        %132 = sbr.rel (%p129) target = $region12
      $region11: #{tpu_custom_call.1} parent=5 // pred_region
        %s133 = ssub.s32 %s17, 1
      $region12: #{tpu_custom_call.1} parent=5 // pred_fallthru
        _
      %p134 = scmp.lt.s32.totalorder %s17, 2
      // Predicated region
      $region13: #{tpu_custom_call.1} parent=5 // pred_check
        %p135 = pneg %p134
      $region14: #{tpu_custom_call.1} parent=5 // pred_check_branch
        %137 = sbr.rel (%p135) target = $region16
      $region15: #{tpu_custom_call.1} parent=5 // pred_region
        // Predicated region
        $region17: #{tpu_custom_call.1} parent=15 // pred_check
          %p138 = pneg %p55
        $region18: #{tpu_custom_call.1} parent=15 // pred_check_branch
          %140 = sbr.rel (%p138) target = $region20
        $region19: #{tpu_custom_call.1} parent=15 // pred_region
          %s141 = sand.u32 %s45, 1
          %s142 = scalar_lea.sflag [#allocation4], %s141
          %s143 = sand.u32 %s45, 1
          %s144 = smul.addr %s143, 6
          %s145 = scalar_lea.vmem [#allocation3], %s144
          %s146 = sadd.s32 %s24, %s25
          %p147 = scmp.lt.s32.totalorder %s146, 0
          %s148 = scalar_select %p147, %s146, 0
          %s150 = ssub.s32 96, 96
          %151 = vsyncadd %s142, %s150
          %s152 = smul.addr %s148, 3
          %s153 = smul.addr %s152, 32
          %s154 = scalar_lea.hbm %s0, %s153
          %s156 = sshll.u32 %s145, 4
          %s157 = int_to_ptr.vmem [resolvable:$true] %s156
          %159 = dma.hbm_to_vmem [thread:$0]  %s154, 96, %s157, %s142
        $region20: #{tpu_custom_call.1} parent=15 // pred_fallthru
          _
        // Predicated region
        $region21: #{tpu_custom_call.1} parent=15 // pred_check
          %p160 = pneg %p87
        $region22: #{tpu_custom_call.1} parent=15 // pred_check_branch
          %162 = sbr.rel (%p160) target = $region24
        $region23: #{tpu_custom_call.1} parent=15 // pred_region
          %s163 = sand.u32 %s77, 1
          %s164 = scalar_lea.sflag [#allocation7], %s163
          %s165 = sand.u32 %s77, 1
          %s166 = smul.addr %s165, 6
          %s167 = scalar_lea.vmem [#allocation6], %s166
          %s168 = sadd.s32 %s24, %s25
          %p169 = scmp.lt.s32.totalorder %s168, 0
          %s170 = scalar_select %p169, %s168, 0
          %s172 = ssub.s32 96, 96
          %173 = vsyncadd %s164, %s172
          %s174 = smul.addr %s170, 3
          %s175 = smul.addr %s174, 32
          %s176 = scalar_lea.hbm %s1, %s175
          %s178 = sshll.u32 %s167, 4
          %s179 = int_to_ptr.vmem [resolvable:$true] %s178
          %181 = dma.hbm_to_vmem [thread:$0]  %s176, 96, %s179, %s164
        $region24: #{tpu_custom_call.1} parent=15 // pred_fallthru
          _
      $region16: #{tpu_custom_call.1} parent=5 // pred_fallthru
        _
      %p182 = scmp.le.s32.totalorder 1, %s17
      %p183 = scmp.lt.s32.totalorder %s17, 3
      %p184 = pnand %p182, %p183
      %p185 = pneg %p184
      // Predicated region
      $region25: #{tpu_custom_call.1} parent=5 // pred_check
        _
      $region26: #{tpu_custom_call.1} parent=5 // pred_check_branch
        %187 = sbr.rel (%p184) target = $region28
      $region27: #{tpu_custom_call.1} parent=5 // pred_region
        %s188 = ssub.s32 %s17, 1
        %s189 = sand.u32 %s48, 1
        %s190 = scalar_lea.sflag [#allocation4], %s189
        %s191 = sand.u32 %s48, 1
        %s192 = smul.addr %s191, 6
        %s193 = scalar_lea.vmem [#allocation3], %s192
        // Predicated region
        $region29: #{tpu_custom_call.1} parent=27 // pred_check
          %p194 = pneg %p61
        $region30: #{tpu_custom_call.1} parent=27 // pred_check_branch
          %196 = sbr.rel (%p194) target = $region32
        $region31: #{tpu_custom_call.1} parent=27 // pred_region
          %197 = dma.done %s190, 96
        $region32: #{tpu_custom_call.1} parent=27 // pred_fallthru
          _
        %s198 = sand.u32 %s80, 1
        %s199 = scalar_lea.sflag [#allocation7], %s198
        %s200 = sand.u32 %s80, 1
        %s201 = smul.addr %s200, 6
        %s202 = scalar_lea.vmem [#allocation6], %s201
        // Predicated region
        $region33: #{tpu_custom_call.1} parent=27 // pred_check
          %p203 = pneg %p93
        $region34: #{tpu_custom_call.1} parent=27 // pred_check_branch
          %205 = sbr.rel (%p203) target = $region36
        $region35: #{tpu_custom_call.1} parent=27 // pred_region
          %206 = dma.done %s199, 96
        $region36: #{tpu_custom_call.1} parent=27 // pred_fallthru
          _
        %s207 = sand.u32 %s48, 1
        %s208 = scalar_lea.sflag [#allocation4], %s207
        %s209 = sand.u32 %s48, 1
        %s210 = smul.addr %s209, 6
        %s211 = scalar_lea.vmem [#allocation3], %s210
        %p212 = pneg %p61
        %p213 = pneg %p58
        %s214 = sand.u32 %s80, 1
        %s215 = scalar_lea.sflag [#allocation7], %s214
        %s216 = sand.u32 %s80, 1
        %s217 = smul.addr %s216, 6
        %s218 = scalar_lea.vmem [#allocation6], %s217
        %p219 = pneg %p93
        %p220 = pneg %p90
        %p221 = pneg %p119
        %p222 = pneg %p116
        %s223 = sand.u32 %s106, 1
        %s224 = scalar_lea.sflag [#allocation5], %s223
        %s225 = sand.u32 %s106, 1
        %s226 = smul.addr %s225, 8
        %s227 = scalar_lea.vmem [#allocation8], %s226
        %s228 = sadd.s32 %s26, %s27
        %p229 = scmp.lt.s32.totalorder %s228, 0
        %s230 = scalar_select %p229, %s228, 0
        %s231 = sadd.s32 %s26, %s27
        %p232 = scmp.lt.s32.totalorder %s231, 0
        %s233 = scalar_select %p232, %s231, 0
        %s234 = sadd.s32 %s26, %s27
        %p235 = scmp.eq.s32.totalorder %s27, 0
        // Predicated region
        $region37: #{tpu_custom_call.1} parent=27 // pred_check
          %p236 = pneg %p235
        $region38: #{tpu_custom_call.1} parent=27 // pred_check_branch
          %238 = sbr.rel (%p236) target = $region40
        $region39: #{tpu_custom_call.1} parent=27 // pred_region
          %vm239 = vcmask 0
          %240 = vst.msk [vmem:[#allocation2] sm:$0x1] %vm239, 0.0
        $region40: #{tpu_custom_call.1} parent=27 // pred_fallthru
          _
        %v241 = vld [vmem:[%s193] sm:$0x3f]
        %v242 = vld [vmem:[%s202] sm:$0x3f]
        %v243 = vmax.f32 %v242, 320.42667
        %v244 = vrcp.pop %v243
        %v245 = vsub.f32 %v242, %v241
        %v246 = vmul.f32 %v245, %v244
        %v247 = vmul.f32 %v246, %v246
        %v248 = vlaneseq
        %v249 = vshrl.u32 %v248, 7
        %v250 = vadd.s32 %v249, 8
        %v251 = vadd.s32 %v249, 16
        %v252 = vadd.s32 %v249, 24
        %v253 = vadd.s32 %v249, 32
        %v254 = vadd.s32 %v249, 40
        %v255 = vadd.s32 %v249, 48
        %v256 = vadd.s32 %v249, 56
        %v257 = vadd.s32 %v249, 64
        %v258 = vadd.s32 %v249, 72
        %v259 = vadd.s32 %v249, 80
        %v260 = vadd.s32 %v249, 88
        %v261 = vadd.s32 %v249, 96
        %v262 = vadd.s32 %v249, 104
        %v263 = vadd.s32 %v249, 112
        %v264 = vadd.s32 %v249, 120
        %v265 = vadd.s32 %v249, 128
        %v266 = vadd.s32 %v249, 136
        %v267 = vadd.s32 %v249, 144
        %v268 = vadd.s32 %v249, 152
        %v269 = vadd.s32 %v249, 160
        %v270 = vadd.s32 %v249, 168
        %v271 = vadd.s32 %v249, 176
        %v272 = vadd.s32 %v249, 184
        %v273 = vadd.s32 %v249, 192
        %v274 = vadd.s32 %v249, 200
        %v275 = vadd.s32 %v249, 208
        %v276 = vadd.s32 %v249, 216
        %v277 = vadd.s32 %v249, 224
        %v278 = vadd.s32 %v249, 232
        %v279 = vadd.s32 %v249, 240
        %v280 = vadd.s32 %v249, 248
        %v281 = vadd.s32 %v249, 256
        %v282 = vadd.s32 %v249, 264
        %v283 = vadd.s32 %v249, 272
        %v284 = vadd.s32 %v249, 280
        %v285 = vadd.s32 %v249, 288
        %v286 = vadd.s32 %v249, 296
        %v287 = vadd.s32 %v249, 304
        %v288 = vadd.s32 %v249, 312
        %v289 = vadd.s32 %v249, 320
        %v290 = vadd.s32 %v249, 328
        %v291 = vadd.s32 %v249, 336
        %v292 = vadd.s32 %v249, 344
        %v293 = vadd.s32 %v249, 352
        %v294 = vadd.s32 %v249, 360
        %v295 = vadd.s32 %v249, 368
        %v296 = vadd.s32 %v249, 376
        %v297 = vlaneseq
        %v298 = vand.u32 %v297, 127
        %v299 = vmul.u32 %v298, 96
        %vm300 = vcmp.ge.s32.totalorder %v249, %v299
        %vm301 = vcmp.ge.s32.totalorder %v250, %v299
        %vm302 = vcmp.ge.s32.totalorder %v251, %v299
        %vm303 = vcmp.ge.s32.totalorder %v252, %v299
        %vm304 = vcmp.ge.s32.totalorder %v253, %v299
        %vm305 = vcmp.ge.s32.totalorder %v254, %v299
        %vm306 = vcmp.ge.s32.totalorder %v255, %v299
        %vm307 = vcmp.ge.s32.totalorder %v256, %v299
        %vm308 = vcmp.ge.s32.totalorder %v257, %v299
        %vm309 = vcmp.ge.s32.totalorder %v258, %v299
        %vm310 = vcmp.ge.s32.totalorder %v259, %v299
        %vm311 = vcmp.ge.s32.totalorder %v260, %v299
        %vm312 = vcmp.ge.s32.totalorder %v261, %v299
        %vm313 = vcmp.ge.s32.totalorder %v262, %v299
        %vm314 = vcmp.ge.s32.totalorder %v263, %v299
        %vm315 = vcmp.ge.s32.totalorder %v264, %v299
        %vm316 = vcmp.ge.s32.totalorder %v265, %v299
        %vm317 = vcmp.ge.s32.totalorder %v266, %v299
        %vm318 = vcmp.ge.s32.totalorder %v267, %v299
        %vm319 = vcmp.ge.s32.totalorder %v268, %v299
        %vm320 = vcmp.ge.s32.totalorder %v269, %v299
        %vm321 = vcmp.ge.s32.totalorder %v270, %v299
        %vm322 = vcmp.ge.s32.totalorder %v271, %v299
        %vm323 = vcmp.ge.s32.totalorder %v272, %v299
        %vm324 = vcmp.ge.s32.totalorder %v273, %v299
        %vm325 = vcmp.ge.s32.totalorder %v274, %v299
        %vm326 = vcmp.ge.s32.totalorder %v275, %v299
        %vm327 = vcmp.ge.s32.totalorder %v276, %v299
        %vm328 = vcmp.ge.s32.totalorder %v277, %v299
        %vm329 = vcmp.ge.s32.totalorder %v278, %v299
        %vm330 = vcmp.ge.s32.totalorder %v279, %v299
        %vm331 = vcmp.ge.s32.totalorder %v280, %v299
        %vm332 = vcmp.ge.s32.totalorder %v281, %v299
        %vm333 = vcmp.ge.s32.totalorder %v282, %v299
        %vm334 = vcmp.ge.s32.totalorder %v283, %v299
        %vm335 = vcmp.ge.s32.totalorder %v284, %v299
        %vm336 = vcmp.ge.s32.totalorder %v285, %v299
        %vm337 = vcmp.ge.s32.totalorder %v286, %v299
        %vm338 = vcmp.ge.s32.totalorder %v287, %v299
        %vm339 = vcmp.ge.s32.totalorder %v288, %v299
        %vm340 = vcmp.ge.s32.totalorder %v289, %v299
        %vm341 = vcmp.ge.s32.totalorder %v290, %v299
        %vm342 = vcmp.ge.s32.totalorder %v291, %v299
        %vm343 = vcmp.ge.s32.totalorder %v292, %v299
        %vm344 = vcmp.ge.s32.totalorder %v293, %v299
        %vm345 = vcmp.ge.s32.totalorder %v294, %v299
        %vm346 = vcmp.ge.s32.totalorder %v295, %v299
        %vm347 = vcmp.ge.s32.totalorder %v296, %v299
        %v348 = vadd.s32 %v298, 1
        %v349 = vmul.u32 %v348, 96
        %vm350 = vcmp.lt.s32.totalorder %v249, %v349
        %vm351 = vcmp.lt.s32.totalorder %v250, %v349
        %vm352 = vcmp.lt.s32.totalorder %v251, %v349
        %vm353 = vcmp.lt.s32.totalorder %v252, %v349
        %vm354 = vcmp.lt.s32.totalorder %v253, %v349
        %vm355 = vcmp.lt.s32.totalorder %v254, %v349
        %vm356 = vcmp.lt.s32.totalorder %v255, %v349
        %vm357 = vcmp.lt.s32.totalorder %v256, %v349
        %vm358 = vcmp.lt.s32.totalorder %v257, %v349
        %vm359 = vcmp.lt.s32.totalorder %v258, %v349
        %vm360 = vcmp.lt.s32.totalorder %v259, %v349
        %vm361 = vcmp.lt.s32.totalorder %v260, %v349
        %vm362 = vcmp.lt.s32.totalorder %v261, %v349
        %vm363 = vcmp.lt.s32.totalorder %v262, %v349
        %vm364 = vcmp.lt.s32.totalorder %v263, %v349
        %vm365 = vcmp.lt.s32.totalorder %v264, %v349
        %vm366 = vcmp.lt.s32.totalorder %v265, %v349
        %vm367 = vcmp.lt.s32.totalorder %v266, %v349
        %vm368 = vcmp.lt.s32.totalorder %v267, %v349
        %vm369 = vcmp.lt.s32.totalorder %v268, %v349
        %vm370 = vcmp.lt.s32.totalorder %v269, %v349
        %vm371 = vcmp.lt.s32.totalorder %v270, %v349
        %vm372 = vcmp.lt.s32.totalorder %v271, %v349
        %vm373 = vcmp.lt.s32.totalorder %v272, %v349
        %vm374 = vcmp.lt.s32.totalorder %v273, %v349
        %vm375 = vcmp.lt.s32.totalorder %v274, %v349
        %vm376 = vcmp.lt.s32.totalorder %v275, %v349
        %vm377 = vcmp.lt.s32.totalorder %v276, %v349
        %vm378 = vcmp.lt.s32.totalorder %v277, %v349
        %vm379 = vcmp.lt.s32.totalorder %v278, %v349
        %vm380 = vcmp.lt.s32.totalorder %v279, %v349
        %vm381 = vcmp.lt.s32.totalorder %v280, %v349
        %vm382 = vcmp.lt.s32.totalorder %v281, %v349
        %vm383 = vcmp.lt.s32.totalorder %v282, %v349
        %vm384 = vcmp.lt.s32.totalorder %v283, %v349
        %vm385 = vcmp.lt.s32.totalorder %v284, %v349
        %vm386 = vcmp.lt.s32.totalorder %v285, %v349
        %vm387 = vcmp.lt.s32.totalorder %v286, %v349
        %vm388 = vcmp.lt.s32.totalorder %v287, %v349
        %vm389 = vcmp.lt.s32.totalorder %v288, %v349
        %vm390 = vcmp.lt.s32.totalorder %v289, %v349
        %vm391 = vcmp.lt.s32.totalorder %v290, %v349
        %vm392 = vcmp.lt.s32.totalorder %v291, %v349
        %vm393 = vcmp.lt.s32.totalorder %v292, %v349
        %vm394 = vcmp.lt.s32.totalorder %v293, %v349
        %vm395 = vcmp.lt.s32.totalorder %v294, %v349
        %vm396 = vcmp.lt.s32.totalorder %v295, %v349
        %vm397 = vcmp.lt.s32.totalorder %v296, %v349
        %vm398 = vmand %vm300, %vm350
        %vm399 = vmand %vm301, %vm351
        %vm400 = vmand %vm302, %vm352
        %vm401 = vmand %vm303, %vm353
        %vm402 = vmand %vm304, %vm354
        %vm403 = vmand %vm305, %vm355
        %vm404 = vmand %vm306, %vm356
        %vm405 = vmand %vm307, %vm357
        %vm406 = vmand %vm308, %vm358
        %vm407 = vmand %vm309, %vm359
        %vm408 = vmand %vm310, %vm360
        %vm409 = vmand %vm311, %vm361
        %vm410 = vmand %vm312, %vm362
        %vm411 = vmand %vm313, %vm363
        %vm412 = vmand %vm314, %vm364
        %vm413 = vmand %vm315, %vm365
        %vm414 = vmand %vm316, %vm366
        %vm415 = vmand %vm317, %vm367
        %vm416 = vmand %vm318, %vm368
        %vm417 = vmand %vm319, %vm369
        %vm418 = vmand %vm320, %vm370
        %vm419 = vmand %vm321, %vm371
        %vm420 = vmand %vm322, %vm372
        %vm421 = vmand %vm323, %vm373
        %vm422 = vmand %vm324, %vm374
        %vm423 = vmand %vm325, %vm375
        %vm424 = vmand %vm326, %vm376
        %vm425 = vmand %vm327, %vm377
        %vm426 = vmand %vm328, %vm378
        %vm427 = vmand %vm329, %vm379
        %vm428 = vmand %vm330, %vm380
        %vm429 = vmand %vm331, %vm381
        %vm430 = vmand %vm332, %vm382
        %vm431 = vmand %vm333, %vm383
        %vm432 = vmand %vm334, %vm384
        %vm433 = vmand %vm335, %vm385
        %vm434 = vmand %vm336, %vm386
        %vm435 = vmand %vm337, %vm387
        %vm436 = vmand %vm338, %vm388
        %vm437 = vmand %vm339, %vm389
        %vm438 = vmand %vm340, %vm390
        %vm439 = vmand %vm341, %vm391
        %vm440 = vmand %vm342, %vm392
        %vm441 = vmand %vm343, %vm393
        %vm442 = vmand %vm344, %vm394
        %vm443 = vmand %vm345, %vm395
        %vm444 = vmand %vm346, %vm396
        %vm445 = vmand %vm347, %vm397
        %v446 = vsel %vm398, 1, 0
        %v447 = vsel %vm399, 1, 0
        %v448 = vsel %vm400, 1, 0
        %v449 = vsel %vm401, 1, 0
        %v450 = vsel %vm402, 1, 0
        %v451 = vsel %vm403, 1, 0
        %v452 = vsel %vm404, 1, 0
        %v453 = vsel %vm405, 1, 0
        %v454 = vsel %vm406, 1, 0
        %v455 = vsel %vm407, 1, 0
        %v456 = vsel %vm408, 1, 0
        %v457 = vsel %vm409, 1, 0
        %v458 = vsel %vm410, 1, 0
        %v459 = vsel %vm411, 1, 0
        %v460 = vsel %vm412, 1, 0
        %v461 = vsel %vm413, 1, 0
        %v462 = vsel %vm414, 1, 0
        %v463 = vsel %vm415, 1, 0
        %v464 = vsel %vm416, 1, 0
        %v465 = vsel %vm417, 1, 0
        %v466 = vsel %vm418, 1, 0
        %v467 = vsel %vm419, 1, 0
        %v468 = vsel %vm420, 1, 0
        %v469 = vsel %vm421, 1, 0
        %v470 = vsel %vm422, 1, 0
        %v471 = vsel %vm423, 1, 0
        %v472 = vsel %vm424, 1, 0
        %v473 = vsel %vm425, 1, 0
        %v474 = vsel %vm426, 1, 0
        %v475 = vsel %vm427, 1, 0
        %v476 = vsel %vm428, 1, 0
        %v477 = vsel %vm429, 1, 0
        %v478 = vsel %vm430, 1, 0
        %v479 = vsel %vm431, 1, 0
        %v480 = vsel %vm432, 1, 0
        %v481 = vsel %vm433, 1, 0
        %v482 = vsel %vm434, 1, 0
        %v483 = vsel %vm435, 1, 0
        %v484 = vsel %vm436, 1, 0
        %v485 = vsel %vm437, 1, 0
        %v486 = vsel %vm438, 1, 0
        %v487 = vsel %vm439, 1, 0
        %v488 = vsel %vm440, 1, 0
        %v489 = vsel %vm441, 1, 0
        %v490 = vsel %vm442, 1, 0
        %v491 = vsel %vm443, 1, 0
        %v492 = vsel %vm444, 1, 0
        %v493 = vsel %vm445, 1, 0
        %v494 = vcvt.s32.f32 %v446
        %v495 = vcvt.s32.f32 %v447
        %v496 = vcvt.s32.f32 %v448
        %v497 = vcvt.s32.f32 %v449
        %v498 = vcvt.s32.f32 %v450
        %v499 = vcvt.s32.f32 %v451
        %v500 = vcvt.s32.f32 %v452
        %v501 = vcvt.s32.f32 %v453
        %v502 = vcvt.s32.f32 %v454
        %v503 = vcvt.s32.f32 %v455
        %v504 = vcvt.s32.f32 %v456
        %v505 = vcvt.s32.f32 %v457
        %v506 = vcvt.s32.f32 %v458
        %v507 = vcvt.s32.f32 %v459
        %v508 = vcvt.s32.f32 %v460
        %v509 = vcvt.s32.f32 %v461
        %v510 = vcvt.s32.f32 %v462
        %v511 = vcvt.s32.f32 %v463
        %v512 = vcvt.s32.f32 %v464
        %v513 = vcvt.s32.f32 %v465
        %v514 = vcvt.s32.f32 %v466
        %v515 = vcvt.s32.f32 %v467
        %v516 = vcvt.s32.f32 %v468
        %v517 = vcvt.s32.f32 %v469
        %v518 = vcvt.s32.f32 %v470
        %v519 = vcvt.s32.f32 %v471
        %v520 = vcvt.s32.f32 %v472
        %v521 = vcvt.s32.f32 %v473
        %v522 = vcvt.s32.f32 %v474
        %v523 = vcvt.s32.f32 %v475
        %v524 = vcvt.s32.f32 %v476
        %v525 = vcvt.s32.f32 %v477
        %v526 = vcvt.s32.f32 %v478
        %v527 = vcvt.s32.f32 %v479
        %v528 = vcvt.s32.f32 %v480
        %v529 = vcvt.s32.f32 %v481
        %v530 = vcvt.s32.f32 %v482
        %v531 = vcvt.s32.f32 %v483
        %v532 = vcvt.s32.f32 %v484
        %v533 = vcvt.s32.f32 %v485
        %v534 = vcvt.s32.f32 %v486
        %v535 = vcvt.s32.f32 %v487
        %v536 = vcvt.s32.f32 %v488
        %v537 = vcvt.s32.f32 %v489
        %v538 = vcvt.s32.f32 %v490
        %v539 = vcvt.s32.f32 %v491
        %v540 = vcvt.s32.f32 %v492
        %v541 = vcvt.s32.f32 %v493
        %v543 = vcombine.high %v247, %v247
        %v545 = vunpack.c.l.s4 1983009808
        %v546 = vunpack.c.0.s8 %v545
        %v547 = vlaneseq
        %v548 = vshrl.u32 %v547, 7
        %v549 = vsub.s32 %v546, %v548
        %v550 = vrot.slane %v247, %v549
        %v552 = vunpack.c.l.s4 1983009808
        %v553 = vunpack.c.0.s8 %v552
        %v554 = vlaneseq
        %v555 = vshrl.u32 %v554, 7
        %v556 = vsub.s32 %v553, %v555
        %v557 = vrot.slane %v543, %v556
        %v558 = vcombine.high %v550, %v550
        %562 = vmatprep.subr.mxu0 0.0
        %563 = vmatpush1.msra.mxu0 %v509
        %564 = vmatprep.subr.mxu0 0.0
        %565 = vmatpush1.msra.mxu0 %v508
        %566 = vmatprep.subr.mxu0 0.0
        %567 = vmatpush1.msra.mxu0 %v507
        %568 = vmatprep.subr.mxu0 0.0
        %569 = vmatpush1.msra.mxu0 %v506
        %570 = vmatprep.subr.mxu0 0.0
        %571 = vmatpush1.msra.mxu0 %v505
        %572 = vmatprep.subr.mxu0 0.0
        %573 = vmatpush1.msra.mxu0 %v504
        %574 = vmatprep.subr.mxu0 0.0
        %575 = vmatpush1.msra.mxu0 %v503
        %576 = vmatprep.subr.mxu0 0.0
        %577 = vmatpush1.msra.mxu0 %v502
        %578 = vmatprep.subr.mxu0 0.0
        %579 = vmatpush1.msra.mxu0 %v501
        %580 = vmatprep.subr.mxu0 0.0
        %581 = vmatpush1.msra.mxu0 %v500
        %582 = vmatprep.subr.mxu0 0.0
        %583 = vmatpush1.msra.mxu0 %v499
        %584 = vmatprep.subr.mxu0 0.0
        %585 = vmatpush1.msra.mxu0 %v498
        %586 = vmatprep.subr.mxu0 0.0
        %587 = vmatpush1.msra.mxu0 %v497
        %588 = vmatprep.subr.mxu0 0.0
        %589 = vmatpush1.msra.mxu0 %v496
        %590 = vmatprep.subr.mxu0 0.0
        %591 = vmatpush1.msra.mxu0 %v495
        %592 = vmatprep.subr.mxu0 0.0
        %593 = vmatpush1.msra.mxu0 %v494
        %594 = vmatprep.subr.mxu0 0.0
        %595 = vmatpush2.msra.mxu0 %v525
        %596 = vmatprep.subr.mxu0 0.0
        %597 = vmatpush2.msra.mxu0 %v524
        %598 = vmatprep.subr.mxu0 0.0
        %599 = vmatpush2.msra.mxu0 %v523
        %600 = vmatprep.subr.mxu0 0.0
        %601 = vmatpush2.msra.mxu0 %v522
        %602 = vmatprep.subr.mxu0 0.0
        %603 = vmatpush2.msra.mxu0 %v521
        %604 = vmatprep.subr.mxu0 0.0
        %605 = vmatpush2.msra.mxu0 %v520
        %606 = vmatprep.subr.mxu0 0.0
        %607 = vmatpush2.msra.mxu0 %v519
        %608 = vmatprep.subr.mxu0 0.0
        %609 = vmatpush2.msra.mxu0 %v518
        %610 = vmatprep.subr.mxu0 0.0
        %611 = vmatpush2.msra.mxu0 %v517
        %612 = vmatprep.subr.mxu0 0.0
        %613 = vmatpush2.msra.mxu0 %v516
        %614 = vmatprep.subr.mxu0 0.0
        %615 = vmatpush2.msra.mxu0 %v515
        %616 = vmatprep.subr.mxu0 0.0
        %617 = vmatpush2.msra.mxu0 %v514
        %618 = vmatprep.subr.mxu0 0.0
        %619 = vmatpush2.msra.mxu0 %v513
        %620 = vmatprep.subr.mxu0 0.0
        %621 = vmatpush2.msra.mxu0 %v512
        %622 = vmatprep.subr.mxu0 0.0
        %623 = vmatpush2.msra.mxu0 %v511
        %624 = vmatprep.subr.mxu0 0.0
        %625 = vmatpush2.msra.mxu0 %v510
        %626 = vmatprep.mubr.f32.mxu0 %v558
        %627 = vmatmul.mubr.f32.gmra.mxu0 %v550
        %v628 = vpop.f32.mrf.mxu0
        %v629 = vadd.f32 0.0, %v628
        %v630 = vpop.f32.mrf.mxu0
        %631 = vdwg.mxu0
        %632 = vmatprep.subr.mxu0 0.0
        %633 = vmatpush1.msra.mxu0 %v541
        %634 = vmatprep.subr.mxu0 0.0
        %635 = vmatpush1.msra.mxu0 %v540
        %636 = vmatprep.subr.mxu0 0.0
        %637 = vmatpush1.msra.mxu0 %v539
        %638 = vmatprep.subr.mxu0 0.0
        %639 = vmatpush1.msra.mxu0 %v538
        %640 = vmatprep.subr.mxu0 0.0
        %641 = vmatpush1.msra.mxu0 %v537
        %642 = vmatprep.subr.mxu0 0.0
        %643 = vmatpush1.msra.mxu0 %v536
        %644 = vmatprep.subr.mxu0 0.0
        %645 = vmatpush1.msra.mxu0 %v535
        %646 = vmatprep.subr.mxu0 0.0
        %647 = vmatpush1.msra.mxu0 %v534
        %648 = vmatprep.subr.mxu0 0.0
        %649 = vmatpush1.msra.mxu0 %v533
        %650 = vmatprep.subr.mxu0 0.0
        %651 = vmatpush1.msra.mxu0 %v532
        %652 = vmatprep.subr.mxu0 0.0
        %653 = vmatpush1.msra.mxu0 %v531
        %654 = vmatprep.subr.mxu0 0.0
        %655 = vmatpush1.msra.mxu0 %v530
        %656 = vmatprep.subr.mxu0 0.0
        %657 = vmatpush1.msra.mxu0 %v529
        %658 = vmatprep.subr.mxu0 0.0
        %659 = vmatpush1.msra.mxu0 %v528
        %660 = vmatprep.subr.mxu0 0.0
        %661 = vmatpush1.msra.mxu0 %v527
        %662 = vmatprep.subr.mxu0 0.0
        %663 = vmatpush1.msra.mxu0 %v526
        %664 = vmatprep.subr.mxu0 0.0
        %665 = vmatpush2.msra.mxu0 0.0
        %666 = vmatprep.subr.mxu0 0.0
        %667 = vmatpush2.msra.mxu0 0.0
        %668 = vmatprep.subr.mxu0 0.0
        %669 = vmatpush2.msra.mxu0 0.0
        %670 = vmatprep.subr.mxu0 0.0
        %671 = vmatpush2.msra.mxu0 0.0
        %672 = vmatprep.subr.mxu0 0.0
        %673 = vmatpush2.msra.mxu0 0.0
        %674 = vmatprep.subr.mxu0 0.0
        %675 = vmatpush2.msra.mxu0 0.0
        %676 = vmatprep.subr.mxu0 0.0
        %677 = vmatpush2.msra.mxu0 0.0
        %678 = vmatprep.subr.mxu0 0.0
        %679 = vmatpush2.msra.mxu0 0.0
        %680 = vmatprep.subr.mxu0 0.0
        %681 = vmatpush2.msra.mxu0 0.0
        %682 = vmatprep.subr.mxu0 0.0
        %683 = vmatpush2.msra.mxu0 0.0
        %684 = vmatprep.subr.mxu0 0.0
        %685 = vmatpush2.msra.mxu0 0.0
        %686 = vmatprep.subr.mxu0 0.0
        %687 = vmatpush2.msra.mxu0 0.0
        %688 = vmatprep.subr.mxu0 0.0
        %689 = vmatpush2.msra.mxu0 0.0
        %690 = vmatprep.subr.mxu0 0.0
        %691 = vmatpush2.msra.mxu0 0.0
        %692 = vmatprep.subr.mxu0 0.0
        %693 = vmatpush2.msra.mxu0 0.0
        %694 = vmatprep.subr.mxu0 0.0
        %695 = vmatpush2.msra.mxu0 0.0
        %696 = vmatprep.mubr.f32.mxu0 0.0
        %697 = vmatmul.mubr.f32.gmra.mxu0 %v557
        %v698 = vpop.f32.mrf.mxu0
        %v699 = vadd.f32 %v629, %v698
        %v700 = vpop.f32.mrf.mxu0
        %701 = vdwg.mxu0
        %v702 = vmul.f32 %v699, 0.010416667
        %v703 = vrsqrt.pop %v702
        %v704 = vmul.f32 %v702, %v703
        %vm705 = vcmp.eq.f32.partialorder %v702, inf
        %v706 = vsel %vm705, %v702, %v704
        %vm707 = vcmp.eq.f32.partialorder %v702, 0.0
        %v708 = vand.u32 %v702, 2147483648
        %v709 = vsel %vm707, %v708, %v706
        %v710 = vsub.f32 1.0, %v709
        %v711 = vmul.f32 %v710, 100.0
        %p712 = scmp.lt.s32.totalorder %s234, 1
        // Predicated region
        $region41: #{tpu_custom_call.1} parent=27 // pred_check
          %p713 = pneg %p712
        $region42: #{tpu_custom_call.1} parent=27 // pred_check_branch
          %715 = sbr.rel (%p713) target = $region44
        $region43: #{tpu_custom_call.1} parent=27 // pred_region
          %v716 = vld [vmem:[#allocation2] sm:$0x1]
          %vm717 = vcmask 25600
          %v718 = vsel %vm717, %v711, 0.0
          %719 = vadd.xlane.f32.xlu0 %v718
          %v720 = vpop.xlane.xlu0 %719
          %v721 = vrot.slane %v720, 4
          %v722 = vadd.f32 %v720, %v721
          %v723 = vrot.slane %v722, 2
          %v724 = vadd.f32 %v722, %v723
          %v725 = vrot.slane %v724, 1
          %v726 = vadd.f32 %v724, %v725
          %s727 = vtos %v726
          %v728 = vstv %s727
          %v729 = vadd.f32 %v716, %v728
          %vm730 = vcmask 0
          %731 = vst.msk [vmem:[#allocation2] sm:$0x1] %vm730, %v729
        $region44: #{tpu_custom_call.1} parent=27 // pred_fallthru
          _
        %p732 = scmp.ge.s32.totalorder %s234, 1
        // Predicated region
        $region45: #{tpu_custom_call.1} parent=27 // pred_check
          %p733 = pneg %p732
        $region46: #{tpu_custom_call.1} parent=27 // pred_check_branch
          %735 = sbr.rel (%p733) target = $region48
        $region47: #{tpu_custom_call.1} parent=27 // pred_region
          %s736 = smul.u32 %s234, 2
          %v737 = vstv %s736
          %v738 = vadd.s32 %v737, %v249
          %v739 = vmul.u32 %v738, 4
          %v740 = vadd.s32 %v739, %v298
          %v741 = vld [vmem:[#allocation2] sm:$0x1]
          %vm742 = vcmp.lt.s32.totalorder %v740, 8
          %v743 = vsel %vm742, %v711, 0.0
          %vm744 = vcmask 25600
          %v745 = vsel %vm744, %v743, 0.0
          %746 = vadd.xlane.f32.xlu0 %v745
          %v747 = vpop.xlane.xlu0 %746
          %v748 = vrot.slane %v747, 4
          %v749 = vadd.f32 %v747, %v748
          %v750 = vrot.slane %v749, 2
          %v751 = vadd.f32 %v749, %v750
          %v752 = vrot.slane %v751, 1
          %v753 = vadd.f32 %v751, %v752
          %s754 = vtos %v753
          %v755 = vstv %s754
          %v756 = vadd.f32 %v741, %v755
          %vm757 = vcmask 0
          %758 = vst.msk [vmem:[#allocation2] sm:$0x1] %vm757, %v756
        $region48: #{tpu_custom_call.1} parent=27 // pred_fallthru
          _
        // Predicated region
        $region49: #{tpu_custom_call.1} parent=27 // pred_check
          %p759 = pneg %p235
        $region50: #{tpu_custom_call.1} parent=27 // pred_check_branch
          %761 = sbr.rel (%p759) target = $region52
        $region51: #{tpu_custom_call.1} parent=27 // pred_region
          %v762 = vld [vmem:[#allocation2] sm:$0x1]
          %v764 = vlaneseq
          %v765 = vshrl.u32 %v764, 7
          %v766 = vsub.s32 0, %v765
          %v767 = vrot.slane %v762, %v766
          %768 = vset.pattern.permute.xlu0 0
          %769 = vperm.xlu0 %768, %v767
          %v770 = vpop.permute.xlu0 %769
          %772 = vst [vmem:[%s227] sm:$0xff] %v770
        $region52: #{tpu_custom_call.1} parent=27 // pred_fallthru
          _
        %s773 = sand.u32 %s106, 1
        %s774 = scalar_lea.sflag [#allocation5], %s773
        %s775 = sand.u32 %s106, 1
        %s776 = smul.addr %s775, 8
        %s777 = scalar_lea.vmem [#allocation8], %s776
        // Predicated region
        $region53: #{tpu_custom_call.1} parent=27 // pred_check
          %p778 = pneg %p116
        $region54: #{tpu_custom_call.1} parent=27 // pred_check_branch
          %780 = sbr.rel (%p778) target = $region56
        $region55: #{tpu_custom_call.1} parent=27 // pred_region
          %s782 = ssub.s32 128, 128
          %783 = vsyncadd %s774, %s782
          %s784 = smul.addr %s26, 128
          %s785 = scalar_lea.hbm %s2, %s784
          %s787 = sshll.u32 %s777, 4
          %s788 = int_to_ptr.vmem [resolvable:$true] %s787
          %790 = dma.vmem_to_hbm [thread:$0]  %s788, 128, %s785, %s774
        $region56: #{tpu_custom_call.1} parent=27 // pred_fallthru
          _
      $region28: #{tpu_custom_call.1} parent=5 // pred_fallthru
        _
      %p791 = scmp.le.s32.totalorder 2, %s17
      // Predicated region
      $region57: #{tpu_custom_call.1} parent=5 // pred_check
        %p792 = pneg %p791
      $region58: #{tpu_custom_call.1} parent=5 // pred_check_branch
        %794 = sbr.rel (%p792) target = $region60
      $region59: #{tpu_custom_call.1} parent=5 // pred_region
        %s795 = ssub.s32 %s17, 2
        // Predicated region
        $region61: #{tpu_custom_call.1} parent=59 // pred_check
          %p796 = pneg %p122
        $region62: #{tpu_custom_call.1} parent=59 // pred_check_branch
          %798 = sbr.rel (%p796) target = $region64
        $region63: #{tpu_custom_call.1} parent=59 // pred_region
          %s799 = sand.u32 %s107, 1
          %s800 = scalar_lea.sflag [#allocation5], %s799
          %s801 = sand.u32 %s107, 1
          %s802 = smul.addr %s801, 8
          %s803 = scalar_lea.vmem [#allocation8], %s802
          %804 = dma.done %s800, 128
        $region64: #{tpu_custom_call.1} parent=59 // pred_fallthru
          _
      $region60: #{tpu_custom_call.1} parent=5 // pred_fallthru
        _
    $region6: #{tpu_custom_call.1} parent=1 // loop_footer
      %s21 = sadd.s32 1, %s17
    $region7: #{tpu_custom_call.1} parent=1 // loop_footer_branch
      %16 = sbr.rel target = $region3
    $region8: #{tpu_custom_call.1} parent=1 // loop_exit
      _
    %805 = vsyncpa [#allocation4], 1
    %s806 = scalar_lea.sflag [#allocation4], 1
    %807 = vsyncpa %s806, 1
    %808 = vsyncpa [#allocation7], 1
    %s809 = scalar_lea.sflag [#allocation7], 1
    %810 = vsyncpa %s809, 1
    %811 = vsyncpa [#allocation5], 1
    %s812 = scalar_lea.sflag [#allocation5], 1
    %813 = vsyncpa %s812, 1

</llo_original>
